<compile_context>
chip_gen: v7x
topology: tpu7x:2x2x1
jax: 0.10.0
libtpu: 0.0.40
codegen_flags: <defaults>
</compile_context>

<pallas_src>
import functools

import jax
import jax.numpy as jnp
from jax.experimental import pallas as pl
from jax.experimental.pallas import tpu as pltpu


def _round_up(x: int, m: int) -> int:
    return ((x + m - 1) // m) * m


def _kami_kernel(logits_ref, tgt_ref, pred_ref, nll_ref, *, batch, tile_b):
    """Per-tile argmax + per-row cross-entropy NLL (padded rows masked to 0)."""
    i = pl.program_id(0)

    logits = logits_ref[...].astype(jnp.float32)            # [TB, C] in-vreg cast
    tb, c = logits.shape

    row_max = jnp.max(logits, axis=1, keepdims=True)         # [TB, 1]
    z = logits - row_max                                      # max entries are exactly 0

    col = jax.lax.broadcasted_iota(jnp.int32, (tb, c), 1)     # [TB, C]

    # ---- process_output: torch.argmax(output, dim=1) (first index on ties) ----
    first_idx = jnp.min(jnp.where(z == 0.0, col, c), axis=1, keepdims=True)
    pred_ref[...] = first_idx.astype(jnp.int32)               # [TB, 1]

    # ---- loss: per-row NLL of nn.CrossEntropyLoss() (mean taken in wrapper) ----
    lse = jnp.log(jnp.sum(jnp.exp(z), axis=1, keepdims=True))                # [TB, 1]
    tgt_z = jnp.sum(jnp.where(col == tgt_ref[...], z, 0.0),
                    axis=1, keepdims=True)                                    # [TB, 1]
    nll = lse - tgt_z

    # Mask rows that are only batch padding.
    row = i * tile_b + jax.lax.broadcasted_iota(jnp.int32, (tb, 1), 0)
    nll_ref[...] = jnp.where(row < batch, nll, 0.0)


def kami_model_fn(output_logits, targets, *, tile_b=None):
    """Returns (predictions[B] int32, mean cross-entropy loss scalar f32)."""
    B, C = output_logits.shape
    dtype = output_logits.dtype
    itemsize = jnp.dtype(dtype).itemsize

    # Sublane multiple for the block's second-to-last dim by element width.
    sub = {4: 8, 2: 16, 1: 32}.get(itemsize, 8)

    if tile_b is None:
        # Size the batch tile from a ~4 MiB (native dtype) VMEM budget so the
        # auto-pipeline amortizes the ~0.35 us/step overhead.
        target_tile_bytes = 4 << 20
        tb = max(sub, (target_tile_bytes // max(C * itemsize, 1)) // sub * sub)
        TB = min(tb, _round_up(B, sub))
    else:
        TB = max(sub, _round_up(int(tile_b), sub))

    B_pad = _round_up(B, TB)
    num_tiles = B_pad // TB

    logits_p = output_logits                    # native dtype — no wrapper f32 cast
    tgt_p = targets.reshape(B, 1).astype(jnp.int32)
    if B_pad != B:
        logits_p = jnp.pad(logits_p, ((0, B_pad - B), (0, 0)))
        tgt_p = jnp.pad(tgt_p, ((0, B_pad - B), (0, 0)))

    kernel = functools.partial(_kami_kernel, batch=B, tile_b=TB)

    # Scoped-VMEM limit: double-buffered input tiles + f32 working set + headroom,
    # kept under v7x's 64 MiB physical VMEM.
    vmem_bytes = int(min(48 << 20, max(16 << 20, 6 * TB * C * 4 + (4 << 20))))

    cost = pl.CostEstimate(
        flops=6 * B_pad * C,
        transcendentals=B_pad * C,
        bytes_accessed=B_pad * C * itemsize + 3 * B_pad * 4,
    )

    pred, nll = pl.pallas_call(
        kernel,
        out_shape=(
            jax.ShapeDtypeStruct((B_pad, 1), jnp.int32),    # argmax per row
            jax.ShapeDtypeStruct((B_pad, 1), jnp.float32),  # NLL per row (padded rows = 0)
        ),
        grid=(num_tiles,),
        in_specs=[
            pl.BlockSpec((TB, C), lambda i: (i, 0)),
            pl.BlockSpec((TB, 1), lambda i: (i, 0)),
        ],
        out_specs=(
            pl.BlockSpec((TB, 1), lambda i: (i, 0)),
            pl.BlockSpec((TB, 1), lambda i: (i, 0)),
        ),
        compiler_params=pltpu.CompilerParams(
            dimension_semantics=("parallel",),
            vmem_limit_bytes=vmem_bytes,
        ),
        cost_estimate=cost,
    )(logits_p, tgt_p)

    loss = jnp.sum(nll[:, 0]) / B               # tiny wrapper-side reduction
    return pred[:B, 0], loss


def _reference(logits, targets):
    ref_pred = jnp.argmax(logits, axis=1).astype(jnp.int32)
    ref_loss = jnp.mean(
        jax.nn.logsumexp(logits, axis=1)
        - jnp.take_along_axis(logits, targets[:, None], axis=1)[:, 0]
    )
    return ref_pred, ref_loss


if __name__ == "__main__":
    key = jax.random.PRNGKey(0)
    k1, k2, k3, k4 = jax.random.split(key, 4)

    # Small classification-style shapes implied by KaMi's loss/process_output.
    B, C = 8, 32
    logits = jax.random.normal(k1, (B, C), dtype=jnp.float32)
    targets = jax.random.randint(k2, (B,), 0, C, dtype=jnp.int32)

    pred, loss = kami_model_fn(logits, targets)
    jax.block_until_ready((pred, loss))

    ref_pred, ref_loss = _reference(logits, targets)
    assert bool(jnp.all(pred == ref_pred)), (pred, ref_pred)
    assert bool(jnp.abs(loss - ref_loss) < 1e-4), (loss, ref_loss)

    # Second check: ragged batch forced through the multi-tile path
    # (exercises batch padding mask + the parallel grid axis).
    B2, C2 = 37, 32
    logits2 = jax.random.normal(k3, (B2, C2), dtype=jnp.float32)
    targets2 = jax.random.randint(k4, (B2,), 0, C2, dtype=jnp.int32)

    pred2, loss2 = kami_model_fn(logits2, targets2, tile_b=8)
    jax.block_until_ready((pred2, loss2))

    ref_pred2, ref_loss2 = _reference(logits2, targets2)
    assert bool(jnp.all(pred2 == ref_pred2)), (pred2, ref_pred2)
    assert bool(jnp.abs(loss2 - ref_loss2) < 1e-4), (loss2, ref_loss2)

    print("KERNEL_OK")
</pallas_src>

<mosaic_0001>
module attributes {stable_mosaic.version = 11 : i64} {
  func.func @_kami_kernel(%arg0: i32, %arg1: memref<8x32xf32, #tpu.memory_space<vmem>>, %arg2: memref<8x1xi32, #tpu.memory_space<vmem>>, %arg3: memref<8x1xi32, #tpu.memory_space<vmem>>, %arg4: memref<8x1xf32, #tpu.memory_space<vmem>>) attributes {dimension_semantics = [#tpu.dimension_semantics<parallel>], iteration_bounds = array<i64: 1>, scalar_prefetch = 0 : i64, scratch_operands = 0 : i64, tpu.core_type = #tpu.core_type<tc>, window_params = [{transform_indices = @transform_0, window_bounds = array<i64: 8, 32>}, {transform_indices = @transform_1, window_bounds = array<i64: 8, 1>}, {transform_indices = @transform_2, window_bounds = array<i64: 8, 1>}, {transform_indices = @transform_3, window_bounds = array<i64: 8, 1>}]} {
    %c0 = arith.constant 0 : index
    %c0_0 = arith.constant 0 : index
    %0 = vector.load %arg1[%c0, %c0_0] : memref<8x32xf32, #tpu.memory_space<vmem>>, vector<8x32xf32>
    %cst = arith.constant dense<0xFF800000> : vector<8xf32>
    %1 = vector.multi_reduction <maximumf>, %0, %cst [1] : vector<8x32xf32> to vector<8xf32>
    %2 = vector.shape_cast %1 : vector<8xf32> to vector<8x1xf32>
    %3 = vector.broadcast %2 : vector<8x1xf32> to vector<8x32xf32>
    %4 = arith.subf %0, %3 : vector<8x32xf32>
    %5 = tpu.iota {dimensions = array<i32: 1>} : vector<8x32xi32>
    %cst_1 = arith.constant 0.000000e+00 : f32
    %6 = vector.broadcast %cst_1 : f32 to vector<8x32xf32>
    %7 = arith.cmpf oeq, %4, %6 : vector<8x32xf32>
    %c32_i32 = arith.constant 32 : i32
    %8 = vector.broadcast %c32_i32 : i32 to vector<8x32xi32>
    %9 = arith.select %7, %5, %8 : vector<8x32xi1>, vector<8x32xi32>
    %cst_2 = arith.constant dense<2147483647> : vector<8xi32>
    %10 = vector.multi_reduction <minsi>, %9, %cst_2 [1] : vector<8x32xi32> to vector<8xi32>
    %11 = vector.shape_cast %10 : vector<8xi32> to vector<8x1xi32>
    %c0_3 = arith.constant 0 : index
    %c0_4 = arith.constant 0 : index
    %12 = vector.load %arg3[%c0_3, %c0_4] : memref<8x1xi32, #tpu.memory_space<vmem>>, vector<8x1xi32>
    tpu.vector_store %arg3[%c0_3, %c0_4], %11 {strides = array<i32>} : memref<8x1xi32, #tpu.memory_space<vmem>>, vector<8x1xi32>,
    %13 = math.exp %4 : vector<8x32xf32>
    %cst_5 = arith.constant dense<0.000000e+00> : vector<8xf32>
    %14 = vector.multi_reduction <add>, %13, %cst_5 [1] : vector<8x32xf32> to vector<8xf32>
    %15 = vector.shape_cast %14 : vector<8xf32> to vector<8x1xf32>
    %16 = math.log %15 : vector<8x1xf32>
    %c0_6 = arith.constant 0 : index
    %c0_7 = arith.constant 0 : index
    %17 = vector.load %arg2[%c0_6, %c0_7] : memref<8x1xi32, #tpu.memory_space<vmem>>, vector<8x1xi32>
    %18 = vector.broadcast %17 : vector<8x1xi32> to vector<8x32xi32>
    %19 = arith.cmpi eq, %5, %18 : vector<8x32xi32>
    %cst_8 = arith.constant 0.000000e+00 : f32
    %20 = vector.broadcast %cst_8 : f32 to vector<8x32xf32>
    %21 = arith.select %19, %4, %20 : vector<8x32xi1>, vector<8x32xf32>
    %cst_9 = arith.constant dense<0.000000e+00> : vector<8xf32>
    %22 = vector.multi_reduction <add>, %21, %cst_9 [1] : vector<8x32xf32> to vector<8xf32>
    %23 = vector.shape_cast %22 : vector<8xf32> to vector<8x1xf32>
    %24 = arith.subf %16, %23 : vector<8x1xf32>
    %c8_i32 = arith.constant 8 : i32
    %25 = arith.muli %arg0, %c8_i32 : i32
    %26 = tpu.iota {dimensions = array<i32: 0>} : vector<8x1xi32>
    %27 = vector.broadcast %25 : i32 to vector<8x1xi32>
    %28 = arith.addi %27, %26 : vector<8x1xi32>
    %c8_i32_10 = arith.constant 8 : i32
    %29 = vector.broadcast %c8_i32_10 : i32 to vector<8x1xi32>
    %30 = arith.cmpi slt, %28, %29 : vector<8x1xi32>
    %cst_11 = arith.constant 0.000000e+00 : f32
    %31 = vector.broadcast %cst_11 : f32 to vector<8x1xf32>
    %32 = arith.select %30, %24, %31 : vector<8x1xi1>, vector<8x1xf32>
    %c0_12 = arith.constant 0 : index
    %c0_13 = arith.constant 0 : index
    %33 = vector.load %arg4[%c0_12, %c0_13] : memref<8x1xf32, #tpu.memory_space<vmem>>, vector<8x1xf32>
    tpu.vector_store %arg4[%c0_12, %c0_13], %32 {strides = array<i32>} : memref<8x1xf32, #tpu.memory_space<vmem>>, vector<8x1xf32>,
    return
  }
  func.func @transform_0(%arg0: i32) -> (i32, i32) {
    %c0_i32 = arith.constant 0 : i32
    %c0_i32_0 = arith.constant 0 : i32
    return %arg0, %c0_i32 : i32, i32
  }
  func.func @transform_1(%arg0: i32) -> (i32, i32) {
    %c0_i32 = arith.constant 0 : i32
    %c0_i32_0 = arith.constant 0 : i32
    return %arg0, %c0_i32 : i32, i32
  }
  func.func @transform_2(%arg0: i32) -> (i32, i32) {
    %c0_i32 = arith.constant 0 : i32
    %c0_i32_0 = arith.constant 0 : i32
    return %arg0, %c0_i32 : i32, i32
  }
  func.func @transform_3(%arg0: i32) -> (i32, i32) {
    %c0_i32 = arith.constant 0 : i32
    %c0_i32_0 = arith.constant 0 : i32
    return %arg0, %c0_i32 : i32, i32
  }
}

</mosaic_0001>

<llo_original>
// kernel: tpu_custom_call.1
$region0: #{tpu_custom_call.1}
  #allocation0 [shape = 'u32[]', space=smem, size = 0x4, offset = 0x4, fixed_abs, tag = 'smem constant byte address 0x4 - core index']
  #allocation1 [shape = 'u32[144,128]{1,0:T(1,128)}', space=vmem, size = 0x12000, scoped, tag = 'internal scratch']
  %s0 = inlined_call_operand.vmem [shape: f32[8,32], index: 0, kind: input, shape index: {}]
  %s1 = inlined_call_operand.vmem [shape: s32[8,1], index: 1, kind: input, shape index: {}]
  %s2 = inlined_call_operand.vmem [shape: s32[8,1], index: 2, kind: output, shape index: {0}]
  %s3 = inlined_call_operand.vmem [shape: f32[8,1], index: 3, kind: output, shape index: {1}]
  %4 = xla_tuple %s2, %s3
  %s5 = sld [smem:[#allocation0]]
  $region26: #{tpu_custom_call.1} parent=0
    _
  %s7 = ssub.s32 1, %s5
  %s8 = scalar_select 0, %s7, %s5
  // Predicated region
  $region2: #{tpu_custom_call.1} parent=0 // pred_check
    _
  $region3: #{tpu_custom_call.1} parent=0 // pred_check_branch
    %10 = sbr.rel (0) target = $region5
  $region4: #{tpu_custom_call.1} parent=0 // pred_region
    _
  $region5: #{tpu_custom_call.1} parent=0 // pred_fallthru
    _
  // Predicated region
  $region6: #{tpu_custom_call.1} parent=0 // pred_check
    _
  $region7: #{tpu_custom_call.1} parent=0 // pred_check_branch
    %12 = sbr.rel (0) target = $region9
  $region8: #{tpu_custom_call.1} parent=0 // pred_region
    _
  $region9: #{tpu_custom_call.1} parent=0 // pred_fallthru
    _
  %v13 = vld [vmem:[%s0] sm:$0xff]
  %vm14 = vcmask 261120
  %v15 = vsel %vm14, %v13, -inf
  %16 = vmax.xlane.f32.xlu0 %v15
  %v17 = vpop.xlane.xlu0 %16
  %v18 = vsub.f32 %v13, %v17
  %v19 = vlaneseq
  %v20 = vand.u32 %v19, 127
  %vm21 = vcmp.eq.f32.partialorder %v18, 0.0
  %v22 = vsel %vm21, %v20, 32
  %v23 = vsel %vm14, %v22, 2147483647
  %v24 = vand.u32 %v23, 65535
  %v25 = vshra.s32 %v23, 16
  %v26 = vcvt.s32.f32 %v24
  %v27 = vcvt.s32.f32 %v25
  %28 = vmin.xlane.f32.xlu0 %v27
  %v29 = vpop.xlane.xlu0 %28
  %vm30 = vcmp.eq.f32.partialorder %v27, %v29
  %v31 = vsel %vm30, %v26, inf
  %32 = vmin.xlane.f32.xlu0 %v31
  %v33 = vpop.xlane.xlu0 %32
  %v34 = vcvt.f32.s32 %v33
  %v35 = vcvt.f32.s32 %v29
  %v36 = vshll.u32 %v35, 16
  %v37 = vadd.s32 %v36, %v34
  %vm38 = vcmask 7168
  %39 = vst.msk [vmem:[%s2] sm:$0xff] %vm38, %v37
  %v40 = vmul.f32 %v18, 1.442695
  %v41 = vpow.pop %v40
  %v42 = vsel %vm14, %v41, 0.0
  %43 = vadd.xlane.f32.xlu0 %v42
  %v44 = vpop.xlane.xlu0 %43
  %v45 = vlog2.pop %v44
  %v46 = vmul.f32 %v45, 0.6931472
  %v47 = vld [vmem:[%s1] sm:$0xff]
  %48 = vset.pattern.permute.xlu0 0
  %49 = vperm.xlu0 %48, %v47
  %v50 = vpop.permute.xlu0 %49
  %vm51 = vcmp.eq.s32.totalorder %v20, %v50
  %v52 = vsel %vm51, %v18, 0.0
  %v53 = vsel %vm14, %v52, 0.0
  %54 = vadd.xlane.f32.xlu0 %v53
  %v55 = vpop.xlane.xlu0 %54
  %v56 = vsub.f32 %v46, %v55
  %s57 = smul.u32 0, 8
  %v58 = vlaneseq
  %v59 = vshrl.u32 %v58, 7
  %v60 = vstv %s57
  %v61 = vadd.s32 %v60, %v59
  %vm62 = vcmp.lt.s32.totalorder %v61, 8
  %v63 = vsel %vm62, %v56, 0.0
  %64 = vst.msk [vmem:[%s3] sm:$0xff] %vm38, %v63
  // Predicated region
  $region10: #{tpu_custom_call.1} parent=0 // pred_check
    _
  $region11: #{tpu_custom_call.1} parent=0 // pred_check_branch
    %66 = sbr.rel (0) target = $region13
  $region12: #{tpu_custom_call.1} parent=0 // pred_region
    _
  $region13: #{tpu_custom_call.1} parent=0 // pred_fallthru
    _
  // Predicated region
  $region14: #{tpu_custom_call.1} parent=0 // pred_check
    _
  $region15: #{tpu_custom_call.1} parent=0 // pred_check_branch
    %68 = sbr.rel (0) target = $region17
  $region16: #{tpu_custom_call.1} parent=0 // pred_region
    _
  $region17: #{tpu_custom_call.1} parent=0 // pred_fallthru
    _
  // Predicated region
  $region18: #{tpu_custom_call.1} parent=0 // pred_check
    _
  $region19: #{tpu_custom_call.1} parent=0 // pred_check_branch
    %70 = sbr.rel (0) target = $region21
  $region20: #{tpu_custom_call.1} parent=0 // pred_region
    _
  $region21: #{tpu_custom_call.1} parent=0 // pred_fallthru
    _
  // Predicated region
  $region22: #{tpu_custom_call.1} parent=0 // pred_check
    _
  $region23: #{tpu_custom_call.1} parent=0 // pred_check_branch
    %72 = sbr.rel (0) target = $region25
  $region24: #{tpu_custom_call.1} parent=0 // pred_region
    _
  $region25: #{tpu_custom_call.1} parent=0 // pred_fallthru
    _

</llo_original>
